<compile_context>
chip_gen: v5e
topology: v5e:2x2
jax: 0.10.0
libtpu: 0.0.40
codegen_flags: <defaults>
</compile_context>

<pallas_src>
import functools

import jax
import jax.numpy as jnp
from jax.experimental import pallas as pl
from jax.experimental.pallas import tpu as pltpu

IGNORE_INDEX = -100


def _round_up(a, b):
    return ((a + b - 1) // b) * b


def _fused_lce_kernel(y_ref, x_ref, w_ref, loss_ref, valid_ref,
                      m_sc, l_sc, t_sc, *, tile_v, ignore_index, num_valid_v):
    j = pl.program_id(1)

    @pl.when(j == 0)
    def _():
        m_sc[...] = jnp.full_like(m_sc, -jnp.inf)
        l_sc[...] = jnp.zeros_like(l_sc)
        t_sc[...] = jnp.zeros_like(t_sc)

    # (tile_n, tile_v) f32 logits; contract on H directly (no operand transpose).
    logits = jax.lax.dot_general(
        x_ref[...], w_ref[...],
        dimension_numbers=(((1,), (1,)), ((), ())),
        preferred_element_type=jnp.float32)

    local_col = jax.lax.broadcasted_iota(jnp.int32, logits.shape, 1)

    if num_valid_v is not None:
        # Vocab axis was padded: padded columns must not contribute to the LSE.
        col_ok = (local_col + j * tile_v) < num_valid_v
        logits = jnp.where(col_ok, logits, -jnp.inf)

    # Online logsumexp accumulation over vocab tiles.
    m_prev = m_sc[...]
    m_new = jnp.maximum(m_prev, logits.max(axis=-1, keepdims=True))
    alpha = jnp.exp(m_prev - m_new)
    l_sc[...] = alpha * l_sc[...] + jnp.exp(logits - m_new).sum(axis=-1,
                                                                keepdims=True)
    m_sc[...] = m_new

    # Target-logit gather: tile-local iota vs. shifted label (one cmp, one
    # masked sum; no full-tile integer add per step).
    y = y_ref[...]                                  # (tile_n, 1) int32
    hit = local_col == (y - j * tile_v)
    t_sc[...] += jnp.where(hit, logits, 0.0).sum(axis=-1, keepdims=True)

    @pl.when(j == pl.num_programs(1) - 1)
    def _():
        valid = y != ignore_index
        lse = m_sc[...] + jnp.log(l_sc[...])
        loss_ref[...] = jnp.where(valid, lse - t_sc[...], 0.0)
        valid_ref[...] = valid.astype(jnp.float32)


def fused_linear_cross_entropy(x, weight, y, *, tile_n=256, tile_v=512,
                               ignore_index=IGNORE_INDEX):
    """logits = x @ weight.T (f32); mean CE over rows where y != ignore_index."""
    N, H = x.shape
    V, H2 = weight.shape
    assert H == H2

    # Adaptive tiles: multiples of (8, 128), never larger than the (rounded) data.
    tile_n = int(min(tile_n, _round_up(N, 8)))
    tile_v = int(min(tile_v, _round_up(V, 128)))

    n_pad = _round_up(N, tile_n)
    v_pad = _round_up(V, tile_v)

    if n_pad != N:
        x = jnp.pad(x, ((0, n_pad - N), (0, 0)))
        y = jnp.pad(y, (0, n_pad - N), constant_values=ignore_index)
    if v_pad != V:
        weight = jnp.pad(weight, ((0, v_pad - V), (0, 0)))

    y2 = y.astype(jnp.int32).reshape(n_pad, 1)

    kernel = functools.partial(
        _fused_lce_kernel, tile_v=tile_v, ignore_index=ignore_index,
        num_valid_v=(V if v_pad != V else None))

    # VMEM budget: double-buffered weight/x tiles + live f32 logit temporaries.
    itemsize_w = jnp.dtype(weight.dtype).itemsize
    itemsize_x = jnp.dtype(x.dtype).itemsize
    vmem_needed = (2 * tile_v * H * itemsize_w
                   + 2 * tile_n * H * itemsize_x
                   + 4 * tile_n * tile_v * 4
                   + (4 << 20))
    vmem_limit = int(min(max(vmem_needed, 32 << 20), 64 << 20))

    per_row_loss, per_row_valid = pl.pallas_call(
        kernel,
        out_shape=(jax.ShapeDtypeStruct((n_pad, 1), jnp.float32),
                   jax.ShapeDtypeStruct((n_pad, 1), jnp.float32)),
        grid_spec=pltpu.PrefetchScalarGridSpec(
            num_scalar_prefetch=0,
            grid=(n_pad // tile_n, v_pad // tile_v),
            in_specs=[
                pl.BlockSpec((tile_n, 1), lambda i, j: (i, 0)),   # labels
                pl.BlockSpec((tile_n, H), lambda i, j: (i, 0)),   # x rows
                pl.BlockSpec((tile_v, H), lambda i, j: (j, 0)),   # weight rows
            ],
            out_specs=[
                pl.BlockSpec((tile_n, 1), lambda i, j: (i, 0)),
                pl.BlockSpec((tile_n, 1), lambda i, j: (i, 0)),
            ],
            scratch_shapes=[
                pltpu.VMEM((tile_n, 1), jnp.float32),  # running max
                pltpu.VMEM((tile_n, 1), jnp.float32),  # running sumexp
                pltpu.VMEM((tile_n, 1), jnp.float32),  # target logit
            ],
        ),
        compiler_params=pltpu.CompilerParams(
            dimension_semantics=("parallel", "arbitrary"),
            vmem_limit_bytes=vmem_limit),
    )(y2, x, weight)

    total = jnp.sum(per_row_loss)
    count = jnp.sum(per_row_valid)
    # reduction='mean' over non-ignored targets; NaN if all ignored (torch parity).
    return total / count


def _reference(x, weight, y, ignore_index=IGNORE_INDEX):
    logits = (x @ weight.T).astype(jnp.float32)
    lse = jax.nn.logsumexp(logits, axis=-1)
    y_safe = jnp.where(y == ignore_index, 0, y)
    tgt = jnp.take_along_axis(logits, y_safe[:, None], axis=-1)[:, 0]
    valid = (y != ignore_index).astype(jnp.float32)
    per_row = (lse - tgt) * valid
    return jnp.sum(per_row) / jnp.sum(valid)


if __name__ == "__main__":
    key = jax.random.PRNGKey(0)
    kx, kw, ky = jax.random.split(key, 3)

    # --- Case 1: small LM-head shapes, default tiling (single vocab tile) ---
    N, H, V = 16, 64, 256
    dtype = jnp.float32

    x = jax.random.normal(kx, (N, H), dtype=dtype)
    # torch.nn.Linear default init: U(-1/sqrt(H), 1/sqrt(H)), weight shape (V, H)
    bound = 1.0 / (H ** 0.5)
    weight = jax.random.uniform(kw, (V, H), dtype=dtype, minval=-bound, maxval=bound)
    y = jax.random.randint(ky, (N,), 0, V, dtype=jnp.int32)
    y = y.at[3].set(IGNORE_INDEX)  # exercise ignore_index

    loss = jax.block_until_ready(fused_linear_cross_entropy(x, weight, y))
    ref = jax.block_until_ready(_reference(x, weight, y))
    assert jnp.isfinite(loss), "non-finite loss (case 1)"
    assert abs(float(loss) - float(ref)) < 2e-4, (float(loss), float(ref))

    # --- Case 2: force multiple row/vocab tiles (exercises online LSE) ---
    loss2 = jax.block_until_ready(
        fused_linear_cross_entropy(x, weight, y, tile_n=8, tile_v=128))
    assert abs(float(loss2) - float(ref)) < 2e-4, (float(loss2), float(ref))

    # --- Case 3: vocab not a multiple of 128 (exercises column masking/padding) ---
    V3 = 200
    w3 = weight[:V3]
    y3 = jnp.clip(y, -100, V3 - 1)
    loss3 = jax.block_until_ready(
        fused_linear_cross_entropy(x, w3, y3, tile_n=8, tile_v=128))
    ref3 = jax.block_until_ready(_reference(x, w3, y3))
    assert abs(float(loss3) - float(ref3)) < 2e-4, (float(loss3), float(ref3))

    print("KERNEL_OK")
</pallas_src>

<mosaic_0001>
module attributes {stable_mosaic.version = 11 : i64} {
  func.func @_fused_lce_kernel(%arg0: i32, %arg1: i32, %arg2: memref<16x1xi32, #tpu.memory_space<vmem>>, %arg3: memref<16x64xf32, #tpu.memory_space<vmem>>, %arg4: memref<256x64xf32, #tpu.memory_space<vmem>>, %arg5: memref<16x1xf32, #tpu.memory_space<vmem>>, %arg6: memref<16x1xf32, #tpu.memory_space<vmem>>, %arg7: memref<16x1xf32, #tpu.memory_space<vmem>>, %arg8: memref<16x1xf32, #tpu.memory_space<vmem>>, %arg9: memref<16x1xf32, #tpu.memory_space<vmem>>) attributes {dimension_semantics = [#tpu.dimension_semantics<parallel>, #tpu.dimension_semantics<arbitrary>], iteration_bounds = array<i64: 1, 1>, scalar_prefetch = 0 : i64, scratch_operands = 3 : i64, tpu.core_type = #tpu.core_type<tc>, window_params = [{transform_indices = @transform_0, window_bounds = array<i64: 16, 1>}, {transform_indices = @transform_1, window_bounds = array<i64: 16, 64>}, {transform_indices = @transform_2, window_bounds = array<i64: 256, 64>}, {transform_indices = @transform_3, window_bounds = array<i64: 16, 1>}, {transform_indices = @transform_4, window_bounds = array<i64: 16, 1>}]} {
    %c0_i32 = arith.constant 0 : i32
    %0 = arith.cmpi eq, %arg1, %c0_i32 : i32
    %1 = arith.extui %0 : i1 to i32
    %c0_i32_0 = arith.constant 0 : i32
    %2 = arith.cmpi ne, %1, %c0_i32_0 : i32
    scf.if %2 {
      %cst_24 = arith.constant 0xFF800000 : f32
      %39 = vector.broadcast %cst_24 : f32 to vector<16x1xf32>
      %c0_25 = arith.constant 0 : index
      %c0_26 = arith.constant 0 : index
      %40 = vector.load %arg7[%c0_25, %c0_26] : memref<16x1xf32, #tpu.memory_space<vmem>>, vector<16x1xf32>
      tpu.vector_store %arg7[%c0_25, %c0_26], %39 {strides = array<i32>} : memref<16x1xf32, #tpu.memory_space<vmem>>, vector<16x1xf32>,
      %cst_27 = arith.constant 0.000000e+00 : f32
      %41 = vector.broadcast %cst_27 : f32 to vector<16x1xf32>
      %c0_28 = arith.constant 0 : index
      %c0_29 = arith.constant 0 : index
      %42 = vector.load %arg8[%c0_28, %c0_29] : memref<16x1xf32, #tpu.memory_space<vmem>>, vector<16x1xf32>
      tpu.vector_store %arg8[%c0_28, %c0_29], %41 {strides = array<i32>} : memref<16x1xf32, #tpu.memory_space<vmem>>, vector<16x1xf32>,
      %cst_30 = arith.constant 0.000000e+00 : f32
      %43 = vector.broadcast %cst_30 : f32 to vector<16x1xf32>
      %c0_31 = arith.constant 0 : index
      %c0_32 = arith.constant 0 : index
      %44 = vector.load %arg9[%c0_31, %c0_32] : memref<16x1xf32, #tpu.memory_space<vmem>>, vector<16x1xf32>
      tpu.vector_store %arg9[%c0_31, %c0_32], %43 {strides = array<i32>} : memref<16x1xf32, #tpu.memory_space<vmem>>, vector<16x1xf32>,
    } else {
    }
    %c0 = arith.constant 0 : index
    %c0_1 = arith.constant 0 : index
    %3 = vector.load %arg3[%c0, %c0_1] : memref<16x64xf32, #tpu.memory_space<vmem>>, vector<16x64xf32>
    %c0_2 = arith.constant 0 : index
    %c0_3 = arith.constant 0 : index
    %4 = vector.load %arg4[%c0_2, %c0_3] : memref<256x64xf32, #tpu.memory_space<vmem>>, vector<256x64xf32>
    %cst = arith.constant dense<0.000000e+00> : vector<16x256xf32>
    %5 = tpu.matmul %3, %4, %cst {dimension_numbers = #tpu.dot_dimension_numbers<[1], [1], [0], [0], [0, 0, 1, 0], [], []>} : vector<16x64xf32>, vector<256x64xf32>, vector<16x256xf32> -> vector<16x256xf32>
    %6 = tpu.iota {dimensions = array<i32: 1>} : vector<16x256xi32>
    %c0_4 = arith.constant 0 : index
    %c0_5 = arith.constant 0 : index
    %7 = vector.load %arg7[%c0_4, %c0_5] : memref<16x1xf32, #tpu.memory_space<vmem>>, vector<16x1xf32>
    %cst_6 = arith.constant dense<0xFF800000> : vector<16xf32>
    %8 = vector.multi_reduction <maximumf>, %5, %cst_6 [1] : vector<16x256xf32> to vector<16xf32>
    %9 = vector.shape_cast %8 : vector<16xf32> to vector<16x1xf32>
    %10 = arith.maximumf %7, %9 : vector<16x1xf32>
    %11 = arith.subf %7, %10 : vector<16x1xf32>
    %12 = math.exp %11 : vector<16x1xf32>
    %c0_7 = arith.constant 0 : index
    %c0_8 = arith.constant 0 : index
    %13 = vector.load %arg8[%c0_7, %c0_8] : memref<16x1xf32, #tpu.memory_space<vmem>>, vector<16x1xf32>
    %14 = arith.mulf %12, %13 : vector<16x1xf32>
    %15 = vector.broadcast %10 : vector<16x1xf32> to vector<16x256xf32>
    %16 = arith.subf %5, %15 : vector<16x256xf32>
    %17 = math.exp %16 : vector<16x256xf32>
    %cst_9 = arith.constant dense<0.000000e+00> : vector<16xf32>
    %18 = vector.multi_reduction <add>, %17, %cst_9 [1] : vector<16x256xf32> to vector<16xf32>
    %19 = vector.shape_cast %18 : vector<16xf32> to vector<16x1xf32>
    %20 = arith.addf %14, %19 : vector<16x1xf32>
    %c0_10 = arith.constant 0 : index
    %c0_11 = arith.constant 0 : index
    %21 = vector.load %arg8[%c0_10, %c0_11] : memref<16x1xf32, #tpu.memory_space<vmem>>, vector<16x1xf32>
    tpu.vector_store %arg8[%c0_10, %c0_11], %20 {strides = array<i32>} : memref<16x1xf32, #tpu.memory_space<vmem>>, vector<16x1xf32>,
    %c0_12 = arith.constant 0 : index
    %c0_13 = arith.constant 0 : index
    %22 = vector.load %arg7[%c0_12, %c0_13] : memref<16x1xf32, #tpu.memory_space<vmem>>, vector<16x1xf32>
    tpu.vector_store %arg7[%c0_12, %c0_13], %10 {strides = array<i32>} : memref<16x1xf32, #tpu.memory_space<vmem>>, vector<16x1xf32>,
    %c0_14 = arith.constant 0 : index
    %c0_15 = arith.constant 0 : index
    %23 = vector.load %arg2[%c0_14, %c0_15] : memref<16x1xi32, #tpu.memory_space<vmem>>, vector<16x1xi32>
    %c256_i32 = arith.constant 256 : i32
    %24 = arith.muli %arg1, %c256_i32 : i32
    %25 = vector.broadcast %24 : i32 to vector<16x1xi32>
    %26 = arith.subi %23, %25 : vector<16x1xi32>
    %27 = vector.broadcast %26 : vector<16x1xi32> to vector<16x256xi32>
    %28 = arith.cmpi eq, %6, %27 : vector<16x256xi32>
    %c0_16 = arith.constant 0 : index
    %c0_17 = arith.constant 0 : index
    %29 = vector.load %arg9[%c0_16, %c0_17] : memref<16x1xf32, #tpu.memory_space<vmem>>, vector<16x1xf32>
    %cst_18 = arith.constant 0.000000e+00 : f32
    %30 = vector.broadcast %cst_18 : f32 to vector<16x256xf32>
    %31 = arith.select %28, %5, %30 : vector<16x256xi1>, vector<16x256xf32>
    %cst_19 = arith.constant dense<0.000000e+00> : vector<16xf32>
    %32 = vector.multi_reduction <add>, %31, %cst_19 [1] : vector<16x256xf32> to vector<16xf32>
    %33 = vector.shape_cast %32 : vector<16xf32> to vector<16x1xf32>
    %34 = arith.addf %29, %33 : vector<16x1xf32>
    %c0_20 = arith.constant 0 : index
    %c0_21 = arith.constant 0 : index
    %35 = vector.load %arg9[%c0_20, %c0_21] : memref<16x1xf32, #tpu.memory_space<vmem>>, vector<16x1xf32>
    tpu.vector_store %arg9[%c0_20, %c0_21], %34 {strides = array<i32>} : memref<16x1xf32, #tpu.memory_space<vmem>>, vector<16x1xf32>,
    %c0_i32_22 = arith.constant 0 : i32
    %36 = arith.cmpi eq, %arg1, %c0_i32_22 : i32
    %37 = arith.extui %36 : i1 to i32
    %c0_i32_23 = arith.constant 0 : i32
    %38 = arith.cmpi ne, %37, %c0_i32_23 : i32
    scf.if %38 {
      %c-100_i32 = arith.constant -100 : i32
      %39 = vector.broadcast %c-100_i32 : i32 to vector<16x1xi32>
      %40 = arith.cmpi ne, %23, %39 : vector<16x1xi32>
      %c0_24 = arith.constant 0 : index
      %c0_25 = arith.constant 0 : index
      %41 = vector.load %arg7[%c0_24, %c0_25] : memref<16x1xf32, #tpu.memory_space<vmem>>, vector<16x1xf32>
      %c0_26 = arith.constant 0 : index
      %c0_27 = arith.constant 0 : index
      %42 = vector.load %arg8[%c0_26, %c0_27] : memref<16x1xf32, #tpu.memory_space<vmem>>, vector<16x1xf32>
      %43 = math.log %42 : vector<16x1xf32>
      %44 = arith.addf %41, %43 : vector<16x1xf32>
      %c0_28 = arith.constant 0 : index
      %c0_29 = arith.constant 0 : index
      %45 = vector.load %arg9[%c0_28, %c0_29] : memref<16x1xf32, #tpu.memory_space<vmem>>, vector<16x1xf32>
      %46 = arith.subf %44, %45 : vector<16x1xf32>
      %cst_30 = arith.constant 0.000000e+00 : f32
      %47 = vector.broadcast %cst_30 : f32 to vector<16x1xf32>
      %48 = arith.select %40, %46, %47 : vector<16x1xi1>, vector<16x1xf32>
      %c0_31 = arith.constant 0 : index
      %c0_32 = arith.constant 0 : index
      %49 = vector.load %arg5[%c0_31, %c0_32] : memref<16x1xf32, #tpu.memory_space<vmem>>, vector<16x1xf32>
      tpu.vector_store %arg5[%c0_31, %c0_32], %48 {strides = array<i32>} : memref<16x1xf32, #tpu.memory_space<vmem>>, vector<16x1xf32>,
      %50 = arith.extui %40 : vector<16x1xi1> to vector<16x1xi32>
      %51 = arith.sitofp %50 : vector<16x1xi32> to vector<16x1xf32>
      %c0_33 = arith.constant 0 : index
      %c0_34 = arith.constant 0 : index
      %52 = vector.load %arg6[%c0_33, %c0_34] : memref<16x1xf32, #tpu.memory_space<vmem>>, vector<16x1xf32>
      tpu.vector_store %arg6[%c0_33, %c0_34], %51 {strides = array<i32>} : memref<16x1xf32, #tpu.memory_space<vmem>>, vector<16x1xf32>,
    } else {
    }
    return
  }
  func.func @transform_0(%arg0: i32, %arg1: i32) -> (i32, i32) {
    %c0_i32 = arith.constant 0 : i32
    %c0_i32_0 = arith.constant 0 : i32
    return %arg0, %c0_i32 : i32, i32
  }
  func.func @transform_1(%arg0: i32, %arg1: i32) -> (i32, i32) {
    %c0_i32 = arith.constant 0 : i32
    %c0_i32_0 = arith.constant 0 : i32
    return %arg0, %c0_i32 : i32, i32
  }
  func.func @transform_2(%arg0: i32, %arg1: i32) -> (i32, i32) {
    %c0_i32 = arith.constant 0 : i32
    %c0_i32_0 = arith.constant 0 : i32
    return %arg1, %c0_i32 : i32, i32
  }
  func.func @transform_3(%arg0: i32, %arg1: i32) -> (i32, i32) {
    %c0_i32 = arith.constant 0 : i32
    %c0_i32_0 = arith.constant 0 : i32
    return %arg0, %c0_i32 : i32, i32
  }
  func.func @transform_4(%arg0: i32, %arg1: i32) -> (i32, i32) {
    %c0_i32 = arith.constant 0 : i32
    %c0_i32_0 = arith.constant 0 : i32
    return %arg0, %c0_i32 : i32, i32
  }
}

</mosaic_0001>

<llo_original>
// kernel: tpu_custom_call.1
$region0: #{tpu_custom_call.1}
  #allocation0 [shape = 'u32[]', space=smem, size = 0x4, offset = 0x4, fixed_abs, tag = 'smem constant byte address 0x4 - core index']
  #allocation1 [shape = 'u32[72,128]{1,0:T(1,128)}', space=vmem, size = 0x9000, scoped, tag = 'internal scratch']
  #allocation2 [shape = 'f32[16,1]{1,0:T(8,128)}', space=vmem, size = 0x2000, scoped, tag = 'scratch operand']
  #allocation3 [shape = 'f32[16,1]{1,0:T(8,128)}', space=vmem, size = 0x2000, scoped, tag = 'scratch operand']
  #allocation4 [shape = 'f32[16,1]{1,0:T(8,128)}', space=vmem, size = 0x2000, scoped, tag = 'scratch operand']
  %s0 = inlined_call_operand.vmem [shape: s32[16,1], index: 0, kind: input, shape index: {}]
  %s1 = inlined_call_operand.vmem [shape: f32[16,64], index: 1, kind: input, shape index: {}]
  %s2 = inlined_call_operand.vmem [shape: f32[256,64], index: 2, kind: input, shape index: {}]
  %s3 = inlined_call_operand.vmem [shape: f32[16,1], index: 3, kind: output, shape index: {0}]
  %s4 = inlined_call_operand.vmem [shape: f32[16,1], index: 4, kind: output, shape index: {1}]
  %5 = xla_tuple %s3, %s4
  %s6 = sld [smem:[#allocation0]]
  $region38: #{tpu_custom_call.1} parent=0
    _
  %s8 = ssub.s32 1, %s6
  %s9 = scalar_select 0, %s8, %s6
  // Predicated region
  $region2: #{tpu_custom_call.1} parent=0 // pred_check
    _
  $region3: #{tpu_custom_call.1} parent=0 // pred_check_branch
    %11 = sbr.rel (0) target = $region5
  $region4: #{tpu_custom_call.1} parent=0 // pred_region
    _
  $region5: #{tpu_custom_call.1} parent=0 // pred_fallthru
    _
  // Predicated region
  $region6: #{tpu_custom_call.1} parent=0 // pred_check
    _
  $region7: #{tpu_custom_call.1} parent=0 // pred_check_branch
    %13 = sbr.rel (0) target = $region9
  $region8: #{tpu_custom_call.1} parent=0 // pred_region
    _
  $region9: #{tpu_custom_call.1} parent=0 // pred_fallthru
    _
  // Predicated region
  $region10: #{tpu_custom_call.1} parent=0 // pred_check
    _
  $region11: #{tpu_custom_call.1} parent=0 // pred_check_branch
    %15 = sbr.rel (0) target = $region13
  $region12: #{tpu_custom_call.1} parent=0 // pred_region
    _
  $region13: #{tpu_custom_call.1} parent=0 // pred_fallthru
    _
  %p16 = scmp.eq.s32.totalorder 0, 0
  // Predicated region
  $region14: #{tpu_custom_call.1} parent=0 // pred_check
    %p17 = pneg %p16
  $region15: #{tpu_custom_call.1} parent=0 // pred_check_branch
    %19 = sbr.rel (%p17) target = $region17
  $region16: #{tpu_custom_call.1} parent=0 // pred_region
    %vm20 = vcmask 7168
    %21 = vst.msk [vmem:[#allocation2] sm:$0xff] %vm20, -inf
    %22 = vst.msk [vmem:[#allocation2 + $0x8] sm:$0xff] %vm20, -inf
    %23 = vst.msk [vmem:[#allocation3] sm:$0xff] %vm20, 0.0
    %24 = vst.msk [vmem:[#allocation3 + $0x8] sm:$0xff] %vm20, 0.0
    %25 = vst.msk [vmem:[#allocation4] sm:$0xff] %vm20, 0.0
    %26 = vst.msk [vmem:[#allocation4 + $0x8] sm:$0xff] %vm20, 0.0
  $region17: #{tpu_custom_call.1} parent=0 // pred_fallthru
    _
  %v27 = vld [vmem:[%s1] sm:$0xff]
  %v28 = vld [vmem:[%s1 + $0x8] sm:$0xff]
  %v29 = vld [vmem:[%s2] sm:$0xff]
  %v30 = vld [vmem:[%s2 + $0x8] sm:$0xff]
  %v31 = vld [vmem:[%s2 + $0x10] sm:$0xff]
  %v32 = vld [vmem:[%s2 + $0x18] sm:$0xff]
  %v33 = vld [vmem:[%s2 + $0x20] sm:$0xff]
  %v34 = vld [vmem:[%s2 + $0x28] sm:$0xff]
  %v35 = vld [vmem:[%s2 + $0x30] sm:$0xff]
  %v36 = vld [vmem:[%s2 + $0x38] sm:$0xff]
  %v37 = vld [vmem:[%s2 + $0x40] sm:$0xff]
  %v38 = vld [vmem:[%s2 + $0x48] sm:$0xff]
  %v39 = vld [vmem:[%s2 + $0x50] sm:$0xff]
  %v40 = vld [vmem:[%s2 + $0x58] sm:$0xff]
  %v41 = vld [vmem:[%s2 + $0x60] sm:$0xff]
  %v42 = vld [vmem:[%s2 + $0x68] sm:$0xff]
  %v43 = vld [vmem:[%s2 + $0x70] sm:$0xff]
  %v44 = vld [vmem:[%s2 + $0x78] sm:$0xff]
  %v45 = vld [vmem:[%s2 + $0x80] sm:$0xff]
  %v46 = vld [vmem:[%s2 + $0x88] sm:$0xff]
  %v47 = vld [vmem:[%s2 + $0x90] sm:$0xff]
  %v48 = vld [vmem:[%s2 + $0x98] sm:$0xff]
  %v49 = vld [vmem:[%s2 + $0xa0] sm:$0xff]
  %v50 = vld [vmem:[%s2 + $0xa8] sm:$0xff]
  %v51 = vld [vmem:[%s2 + $0xb0] sm:$0xff]
  %v52 = vld [vmem:[%s2 + $0xb8] sm:$0xff]
  %v53 = vld [vmem:[%s2 + $0xc0] sm:$0xff]
  %v54 = vld [vmem:[%s2 + $0xc8] sm:$0xff]
  %v55 = vld [vmem:[%s2 + $0xd0] sm:$0xff]
  %v56 = vld [vmem:[%s2 + $0xd8] sm:$0xff]
  %v57 = vld [vmem:[%s2 + $0xe0] sm:$0xff]
  %v58 = vld [vmem:[%s2 + $0xe8] sm:$0xff]
  %v59 = vld [vmem:[%s2 + $0xf0] sm:$0xff]
  %v60 = vld [vmem:[%s2 + $0xf8] sm:$0xff]
  %vm61 = vcmask 523264
  %v63 = vsel %vm61, %v27, 0
  %v66 = vsel %vm61, %v28, 0
  %v69 = vsel %vm61, %v29, 0
  %v72 = vsel %vm61, %v30, 0
  %v75 = vsel %vm61, %v31, 0
  %v78 = vsel %vm61, %v32, 0
  %v81 = vsel %vm61, %v33, 0
  %v84 = vsel %vm61, %v34, 0
  %v87 = vsel %vm61, %v35, 0
  %v90 = vsel %vm61, %v36, 0
  %v93 = vsel %vm61, %v37, 0
  %v96 = vsel %vm61, %v38, 0
  %v99 = vsel %vm61, %v39, 0
  %v102 = vsel %vm61, %v40, 0
  %v105 = vsel %vm61, %v41, 0
  %v108 = vsel %vm61, %v42, 0
  %v111 = vsel %vm61, %v43, 0
  %v114 = vsel %vm61, %v44, 0
  %v117 = vsel %vm61, %v45, 0
  %v120 = vsel %vm61, %v46, 0
  %v123 = vsel %vm61, %v47, 0
  %v126 = vsel %vm61, %v48, 0
  %v129 = vsel %vm61, %v49, 0
  %v132 = vsel %vm61, %v50, 0
  %v135 = vsel %vm61, %v51, 0
  %v138 = vsel %vm61, %v52, 0
  %v141 = vsel %vm61, %v53, 0
  %v144 = vsel %vm61, %v54, 0
  %v147 = vsel %vm61, %v55, 0
  %v150 = vsel %vm61, %v56, 0
  %v153 = vsel %vm61, %v57, 0
  %v156 = vsel %vm61, %v58, 0
  %v159 = vsel %vm61, %v59, 0
  %v162 = vsel %vm61, %v60, 0
  %164 = vmatpush.xpose.msra.mxu0 %v114
  %165 = vmatpush.xpose.msra.mxu0 %v111
  %166 = vmatpush.xpose.msra.mxu0 %v108
  %167 = vmatpush.xpose.msra.mxu0 %v105
  %168 = vmatpush.xpose.msra.mxu0 %v102
  %169 = vmatpush.xpose.msra.mxu0 %v99
  %170 = vmatpush.xpose.msra.mxu0 %v96
  %171 = vmatpush.xpose.msra.mxu0 %v93
  %172 = vmatpush.xpose.msra.mxu0 %v90
  %173 = vmatpush.xpose.msra.mxu0 %v87
  %174 = vmatpush.xpose.msra.mxu0 %v84
  %175 = vmatpush.xpose.msra.mxu0 %v81
  %176 = vmatpush.xpose.msra.mxu0 %v78
  %177 = vmatpush.xpose.msra.mxu0 %v75
  %178 = vmatpush.xpose.msra.mxu0 %v72
  %179 = vmatpush.xpose.msra.mxu0 %v69
  %180 = vmatmul.f32.gmra.mxu0 %v63
  %v181 = vpop.f32.mrf.mxu0
  %v182 = vadd.f32 0.0, %v181
  %183 = vmatmul.f32.gmra.mxu0 %v66
  %v184 = vpop.f32.mrf.mxu0
  %v185 = vadd.f32 0.0, %v184
  %186 = vdwg.mxu0
  %187 = vmatpush.xpose.msra.mxu0 %v162
  %188 = vmatpush.xpose.msra.mxu0 %v159
  %189 = vmatpush.xpose.msra.mxu0 %v156
  %190 = vmatpush.xpose.msra.mxu0 %v153
  %191 = vmatpush.xpose.msra.mxu0 %v150
  %192 = vmatpush.xpose.msra.mxu0 %v147
  %193 = vmatpush.xpose.msra.mxu0 %v144
  %194 = vmatpush.xpose.msra.mxu0 %v141
  %195 = vmatpush.xpose.msra.mxu0 %v138
  %196 = vmatpush.xpose.msra.mxu0 %v135
  %197 = vmatpush.xpose.msra.mxu0 %v132
  %198 = vmatpush.xpose.msra.mxu0 %v129
  %199 = vmatpush.xpose.msra.mxu0 %v126
  %200 = vmatpush.xpose.msra.mxu0 %v123
  %201 = vmatpush.xpose.msra.mxu0 %v120
  %202 = vmatpush.xpose.msra.mxu0 %v117
  %203 = vmatmul.f32.gmra.mxu0 %v63
  %v204 = vpop.f32.mrf.mxu0
  %v205 = vadd.f32 0.0, %v204
  %206 = vmatmul.f32.gmra.mxu0 %v66
  %v207 = vpop.f32.mrf.mxu0
  %v208 = vadd.f32 0.0, %v207
  %209 = vdwg.mxu0
  %v210 = vlaneseq
  %v211 = vand.u32 %v210, 127
  %v212 = vadd.s32 %v211, 128
  %v213 = vld [vmem:[#allocation2] sm:$0xff]
  %v214 = vld [vmem:[#allocation2 + $0x8] sm:$0xff]
  %v215 = vmax.f32 %v182, %v205
  %216 = vmax.xlane.f32.xlu0 %v215
  %v217 = vpop.xlane.xlu0 %216
  %v218 = vmax.f32 %v185, %v208
  %219 = vmax.xlane.f32.xlu0 %v218
  %v220 = vpop.xlane.xlu0 %219
  %v221 = vmax.f32 %v213, %v217
  %v222 = vmax.f32 %v214, %v220
  %v223 = vsub.f32 %v213, %v221
  %v224 = vsub.f32 %v214, %v222
  %v225 = vmul.f32 %v223, 1.442695
  %v226 = vpow.pop %v225
  %v227 = vmul.f32 %v224, 1.442695
  %v228 = vpow.pop %v227
  %v229 = vld [vmem:[#allocation3] sm:$0xff]
  %v230 = vld [vmem:[#allocation3 + $0x8] sm:$0xff]
  %v231 = vmul.f32 %v226, %v229
  %v232 = vmul.f32 %v228, %v230
  %234 = vset.pattern.permute.xlu0 0
  %235 = vperm.xlu0 %234, %v221
  %v236 = vpop.permute.xlu0 %235
  %239 = vset.pattern.permute.xlu0 0
  %240 = vperm.xlu0 %239, %v222
  %v241 = vpop.permute.xlu0 %240
  %v243 = vsub.f32 %v182, %v236
  %v244 = vsub.f32 %v205, %v236
  %v245 = vsub.f32 %v185, %v241
  %v246 = vsub.f32 %v208, %v241
  %v247 = vmul.f32 %v243, 1.442695
  %v248 = vpow.pop %v247
  %v249 = vmul.f32 %v244, 1.442695
  %v250 = vpow.pop %v249
  %v251 = vmul.f32 %v245, 1.442695
  %v252 = vpow.pop %v251
  %v253 = vmul.f32 %v246, 1.442695
  %v254 = vpow.pop %v253
  %v255 = vadd.f32 %v248, %v250
  %256 = vadd.xlane.f32.xlu0 %v255
  %v257 = vpop.xlane.xlu0 %256
  %v258 = vadd.f32 %v252, %v254
  %259 = vadd.xlane.f32.xlu0 %v258
  %v260 = vpop.xlane.xlu0 %259
  %v261 = vadd.f32 %v231, %v257
  %v262 = vadd.f32 %v232, %v260
  %vm263 = vcmask 7168
  %264 = vst.msk [vmem:[#allocation3] sm:$0xff] %vm263, %v261
  %265 = vst.msk [vmem:[#allocation3 + $0x8] sm:$0xff] %vm263, %v262
  %266 = vst.msk [vmem:[#allocation2] sm:$0xff] %vm263, %v221
  %267 = vst.msk [vmem:[#allocation2 + $0x8] sm:$0xff] %vm263, %v222
  %v268 = vld [vmem:[%s0] sm:$0xff]
  %v269 = vld [vmem:[%s0 + $0x8] sm:$0xff]
  %s270 = smul.u32 0, 256
  %v271 = vstv %s270
  %v272 = vsub.s32 %v268, %v271
  %v273 = vsub.s32 %v269, %v271
  %274 = vset.pattern.permute.xlu0 0
  %275 = vperm.xlu0 %274, %v272
  %v276 = vpop.permute.xlu0 %275
  %277 = vset.pattern.permute.xlu0 0
  %278 = vperm.xlu0 %277, %v273
  %v279 = vpop.permute.xlu0 %278
  %vm280 = vcmp.eq.s32.totalorder %v211, %v276
  %vm281 = vcmp.eq.s32.totalorder %v212, %v276
  %vm282 = vcmp.eq.s32.totalorder %v211, %v279
  %vm283 = vcmp.eq.s32.totalorder %v212, %v279
  %v284 = vld [vmem:[#allocation4] sm:$0xff]
  %v285 = vld [vmem:[#allocation4 + $0x8] sm:$0xff]
  %v286 = vsel %vm280, %v182, 0.0
  %v287 = vsel %vm281, %v205, 0.0
  %v288 = vsel %vm282, %v185, 0.0
  %v289 = vsel %vm283, %v208, 0.0
  %v290 = vadd.f32 %v286, %v287
  %291 = vadd.xlane.f32.xlu0 %v290
  %v292 = vpop.xlane.xlu0 %291
  %v293 = vadd.f32 %v288, %v289
  %294 = vadd.xlane.f32.xlu0 %v293
  %v295 = vpop.xlane.xlu0 %294
  %v296 = vadd.f32 %v284, %v292
  %v297 = vadd.f32 %v285, %v295
  %298 = vst.msk [vmem:[#allocation4] sm:$0xff] %vm263, %v296
  %299 = vst.msk [vmem:[#allocation4 + $0x8] sm:$0xff] %vm263, %v297
  // Predicated region
  $region18: #{tpu_custom_call.1} parent=0 // pred_check
    %p300 = pneg %p16
  $region19: #{tpu_custom_call.1} parent=0 // pred_check_branch
    %302 = sbr.rel (%p300) target = $region21
  $region20: #{tpu_custom_call.1} parent=0 // pred_region
    %vm303 = vcmp.ne.s32.totalorder %v268, 4294967196
    %vm304 = vcmp.ne.s32.totalorder %v269, 4294967196
    %v305 = vld [vmem:[#allocation2] sm:$0xff]
    %v306 = vld [vmem:[#allocation2 + $0x8] sm:$0xff]
    %v307 = vld [vmem:[#allocation3] sm:$0xff]
    %v308 = vld [vmem:[#allocation3 + $0x8] sm:$0xff]
    %v309 = vlog2.pop %v307
    %v310 = vmul.f32 %v309, 0.6931472
    %v311 = vlog2.pop %v308
    %v312 = vmul.f32 %v311, 0.6931472
    %v313 = vadd.f32 %v305, %v310
    %v314 = vadd.f32 %v306, %v312
    %v315 = vld [vmem:[#allocation4] sm:$0xff]
    %v316 = vld [vmem:[#allocation4 + $0x8] sm:$0xff]
    %v317 = vsub.f32 %v313, %v315
    %v318 = vsub.f32 %v314, %v316
    %v319 = vsel %vm303, %v317, 0.0
    %v320 = vsel %vm304, %v318, 0.0
    %321 = vst.msk [vmem:[%s3] sm:$0xff] %vm263, %v319
    %322 = vst.msk [vmem:[%s3 + $0x8] sm:$0xff] %vm263, %v320
    %v323 = vsel %vm303, 1, 0
    %v324 = vsel %vm304, 1, 0
    %v325 = vcvt.s32.f32 %v323
    %v326 = vcvt.s32.f32 %v324
    %327 = vst.msk [vmem:[%s4] sm:$0xff] %vm263, %v325
    %328 = vst.msk [vmem:[%s4 + $0x8] sm:$0xff] %vm263, %v326
  $region21: #{tpu_custom_call.1} parent=0 // pred_fallthru
    _
  // Predicated region
  $region22: #{tpu_custom_call.1} parent=0 // pred_check
    _
  $region23: #{tpu_custom_call.1} parent=0 // pred_check_branch
    %330 = sbr.rel (0) target = $region25
  $region24: #{tpu_custom_call.1} parent=0 // pred_region
    _
  $region25: #{tpu_custom_call.1} parent=0 // pred_fallthru
    _
  // Predicated region
  $region26: #{tpu_custom_call.1} parent=0 // pred_check
    _
  $region27: #{tpu_custom_call.1} parent=0 // pred_check_branch
    %332 = sbr.rel (0) target = $region29
  $region28: #{tpu_custom_call.1} parent=0 // pred_region
    _
  $region29: #{tpu_custom_call.1} parent=0 // pred_fallthru
    _
  // Predicated region
  $region30: #{tpu_custom_call.1} parent=0 // pred_check
    _
  $region31: #{tpu_custom_call.1} parent=0 // pred_check_branch
    %334 = sbr.rel (0) target = $region33
  $region32: #{tpu_custom_call.1} parent=0 // pred_region
    _
  $region33: #{tpu_custom_call.1} parent=0 // pred_fallthru
    _
  // Predicated region
  $region34: #{tpu_custom_call.1} parent=0 // pred_check
    _
  $region35: #{tpu_custom_call.1} parent=0 // pred_check_branch
    %336 = sbr.rel (0) target = $region37
  $region36: #{tpu_custom_call.1} parent=0 // pred_region
    _
  $region37: #{tpu_custom_call.1} parent=0 // pred_fallthru
    _

</llo_original>
